<compile_context>
chip_gen: v5e
topology: v5e:2x2
jax: 0.10.0
libtpu: 0.0.40
codegen_flags: <defaults>
</compile_context>

<pallas_src>
import functools
import math

import jax
import jax.numpy as jnp
from jax.experimental import pallas as pl
from jax.experimental.pallas import tpu as pltpu


# --------------------------- hardware-aware sizing --------------------------- #

def _vmem_limit_bytes():
    """Generation-aware scoped-VMEM budget (~75% of physical, capped at 100 MiB)."""
    try:
        cap = int(pltpu.get_tpu_info().vmem_capacity_bytes)
    except Exception:
        cap = 64 * 1024 * 1024                      # conservative v7x fallback
    return max(32 * 1024 * 1024, min((cap * 3) // 4, 100 * 1024 * 1024))


_VMEM_LIMIT = _vmem_limit_bytes()


def _tile_sublane(dim, pref):
    """Second-minor-axis tile: multiple of 16 (bf16 sublane packing) dividing dim,
    falling back to multiples of 8, else the full dim."""
    if dim <= pref:
        return dim
    for step in (16, 8):
        start = pref - (pref % step)
        for t in range(start, step - 1, -step):
            if dim % t == 0:
                return t
    return dim


def _tile_lane(dim, pref):
    """Minor (lane) axis tile: multiple of 128 dividing dim, else the full dim."""
    if dim <= pref:
        return dim
    start = pref - (pref % 128)
    for t in range(start, 127, -128):
        if dim % t == 0:
            return t
    return dim


# ------------------------- fused matmul Pallas kernel ----------------------- #
# Y = epilogue( X @ W + b )   with optional epilogue = activation, +residual,
# LayerNorm.  X:(M,K) bf16, W:(K,N) bf16, accumulation f32, epilogue f32.

def _matmul_fused_kernel(*refs, activation, has_residual, has_ln, eps):
    x_ref, w_ref, b_ref = refs[:3]
    pos = 3
    if has_residual:
        res_ref = refs[pos]
        pos += 1
    if has_ln:
        g_ref, beta_ref = refs[pos], refs[pos + 1]
        pos += 2
    o_ref, acc_ref = refs[pos], refs[pos + 1]

    k = pl.program_id(2)

    @pl.when(k == 0)
    def _():
        acc_ref[...] = jnp.zeros_like(acc_ref)

    acc_ref[...] += jnp.dot(x_ref[...], w_ref[...],
                            preferred_element_type=jnp.float32)

    @pl.when(k == pl.num_programs(2) - 1)
    def _():
        y = acc_ref[...] + b_ref[...].astype(jnp.float32)
        if activation == "gelu":
            # TODO(synk): HF BERT default is exact (erf) GELU; tanh-approx differs ~1e-3.
            y = jax.nn.gelu(y, approximate=True)
        elif activation == "tanh":
            y = jnp.tanh(y)
        if has_residual:
            y = y + res_ref[...].astype(jnp.float32)
        if has_ln:
            mean = jnp.mean(y, axis=-1, keepdims=True)
            var = jnp.mean((y - mean) ** 2, axis=-1, keepdims=True)
            y = (y - mean) * jax.lax.rsqrt(var + eps)
            y = y * g_ref[...] + beta_ref[...]
        o_ref[...] = y.astype(o_ref.dtype)


def matmul_fused(x, w, b, *, activation="none", residual=None, ln_params=None,
                 out_dtype=jnp.bfloat16, eps=1e-12):
    """act(X @ W + b) [+ residual] [-> LayerNorm]; tiled + pipelined."""
    M, K = x.shape
    _, N = w.shape

    tm = _tile_sublane(M, 512)
    # Deep K tiles: fewer f32-accumulator revisits (single vst slot on v5e).
    tk = K if K <= 2048 else _tile_lane(K, 512)
    # LayerNorm reduces over the full hidden axis, so keep N in one block then.
    tn = N if ln_params is not None else _tile_lane(N, 1024)
    grid = (M // tm, N // tn, K // tk)

    # TODO(synk): try pipeline_mode=pl.Buffered(3) on the weight spec when the
    # K grid axis is deep and DMA is exposed (v6e mem-bound regime).
    in_specs = [
        pl.BlockSpec((tm, tk), lambda i, j, k: (i, k)),
        pl.BlockSpec((tk, tn), lambda i, j, k: (k, j)),
        pl.BlockSpec((1, tn), lambda i, j, k: (0, j)),
    ]
    args = [x, w, b.reshape(1, N)]
    if residual is not None:
        in_specs.append(pl.BlockSpec((tm, tn), lambda i, j, k: (i, j)))
        args.append(residual)
    if ln_params is not None:
        gamma, beta = ln_params
        in_specs.append(pl.BlockSpec((1, tn), lambda i, j, k: (0, j)))
        in_specs.append(pl.BlockSpec((1, tn), lambda i, j, k: (0, j)))
        args.extend([gamma.reshape(1, N), beta.reshape(1, N)])

    kern = functools.partial(
        _matmul_fused_kernel, activation=activation,
        has_residual=residual is not None, has_ln=ln_params is not None, eps=eps)

    transcendentals = M * N if activation in ("gelu", "tanh") else 0
    bytes_accessed = int(x.size * x.dtype.itemsize + w.size * w.dtype.itemsize
                         + N * 4 + M * N * jnp.dtype(out_dtype).itemsize)
    if residual is not None:
        bytes_accessed += int(residual.size * residual.dtype.itemsize)
    if ln_params is not None:
        bytes_accessed += int(2 * N * 4)

    return pl.pallas_call(
        kern,
        out_shape=jax.ShapeDtypeStruct((M, N), out_dtype),
        grid=grid,
        in_specs=in_specs,
        out_specs=pl.BlockSpec((tm, tn), lambda i, j, k: (i, j)),
        scratch_shapes=[pltpu.VMEM((tm, tn), jnp.float32)],
        compiler_params=pltpu.CompilerParams(
            dimension_semantics=("parallel", "parallel", "arbitrary"),
            vmem_limit_bytes=_VMEM_LIMIT),
        cost_estimate=pl.CostEstimate(flops=2 * M * N * K,
                                      transcendentals=transcendentals,
                                      bytes_accessed=bytes_accessed),
    )(*args)


# ----------------------------- LayerNorm kernel ----------------------------- #
# Used only for the embedding LayerNorm (no residual, no preceding matmul).

def _layernorm_kernel(x_ref, g_ref, b_ref, o_ref, *, eps):
    x = x_ref[...].astype(jnp.float32)
    mean = jnp.mean(x, axis=-1, keepdims=True)
    var = jnp.mean((x - mean) ** 2, axis=-1, keepdims=True)
    y = (x - mean) * jax.lax.rsqrt(var + eps)
    o_ref[...] = (y * g_ref[...] + b_ref[...]).astype(o_ref.dtype)


def layernorm(x, gamma, beta, *, eps=1e-12, out_dtype=jnp.bfloat16):
    M, H = x.shape
    tm = _tile_sublane(M, 512)
    return pl.pallas_call(
        functools.partial(_layernorm_kernel, eps=eps),
        out_shape=jax.ShapeDtypeStruct((M, H), out_dtype),
        grid=(M // tm,),
        in_specs=[pl.BlockSpec((tm, H), lambda i: (i, 0)),
                  pl.BlockSpec((1, H), lambda i: (0, 0)),
                  pl.BlockSpec((1, H), lambda i: (0, 0))],
        out_specs=pl.BlockSpec((tm, H), lambda i: (i, 0)),
        compiler_params=pltpu.CompilerParams(
            dimension_semantics=("parallel",),
            vmem_limit_bytes=_VMEM_LIMIT),
        cost_estimate=pl.CostEstimate(flops=6 * M * H, transcendentals=0,
                                      bytes_accessed=int(2 * M * H * 4)),
    )(x, gamma.reshape(1, H), beta.reshape(1, H))


# ----------------------------- attention kernel ----------------------------- #
# Grid = (batch, S // tq).  Per step: a (tq, 3H) q-row block, a full-seq
# (S, 3H) K/V block (block index constant across q-tiles, so fetched once per
# batch), and a (tq, H) f32 scratch that collects per-head context in
# >=128-lane head groups; the output is one lane-dense (tq, H) bf16 store.
# The 1/sqrt(head_dim) scale is folded into W_q/b_q at parameter-build time.

def _attention_kernel(q_ref, kv_ref, m_ref, o_ref, ctx_ref, *, num_heads, head_dim):
    H = num_heads * head_dim
    m = m_ref[0]                              # (1, S) f32 additive mask
    q_all = q_ref[:, 0:H]                     # (tq, H) bf16 (already scaled)
    k_all = kv_ref[:, H:2 * H]                # (S, H) bf16
    v_all = kv_ref[:, 2 * H:3 * H]            # (S, H) bf16

    # Process heads in groups whose concatenated width is >=128 lanes so that
    # every scratch store is lane-dense (pairs heads when head_dim == 64).
    group = max(1, min(num_heads, 128 // head_dim)) if head_dim < 128 else 1
    for g0 in range(0, num_heads, group):
        g1 = min(g0 + group, num_heads)
        parts = []
        for h in range(g0, g1):
            lo, hi = h * head_dim, (h + 1) * head_dim
            qh, kh, vh = q_all[:, lo:hi], k_all[:, lo:hi], v_all[:, lo:hi]
            # (tq, S) scores: contract last dims directly (no materialized k.T).
            s = jax.lax.dot_general(qh, kh, (((1,), (1,)), ((), ())),
                                    preferred_element_type=jnp.float32)
            s = s + m
            s = s - jnp.max(s, axis=-1, keepdims=True)
            p = jnp.exp(s)
            denom = jnp.sum(p, axis=-1, keepdims=True)
            p = p * pl.reciprocal(denom, approx=True)        # EUP slot, not VALU
            parts.append(jnp.dot(p.astype(vh.dtype), vh,
                                 preferred_element_type=jnp.float32))
        slab = parts[0] if len(parts) == 1 else jnp.concatenate(parts, axis=-1)
        ctx_ref[:, g0 * head_dim:g1 * head_dim] = slab
    o_ref[...] = ctx_ref[...].astype(o_ref.dtype)


def attention(qkv, add_mask, *, batch, seq, num_heads, head_dim):
    """qkv:(B*S, 3H) bf16, add_mask:(B,1,S) f32 additive -> ctx:(B*S, H) bf16."""
    # TODO(synk): for very long sequences add an inner KV grid axis with
    # flash-style online softmax instead of a full-seq K/V block.
    H = num_heads * head_dim
    BS = batch * seq
    tq = _tile_sublane(seq, 256)              # query-row tile bounds live scores
    nqt = seq // tq

    kern = functools.partial(_attention_kernel, num_heads=num_heads,
                             head_dim=head_dim)
    flops = 4 * batch * num_heads * seq * seq * head_dim
    bytes_accessed = int(2 * qkv.size * qkv.dtype.itemsize
                         + add_mask.size * 4 + BS * H * 2)

    return pl.pallas_call(
        kern,
        out_shape=jax.ShapeDtypeStruct((BS, H), jnp.bfloat16),
        grid=(batch, nqt),
        in_specs=[
            # q rows of the current tile; full 3H lane width keeps the BlockSpec
            # legal for any hidden size (only the first H lanes are read).
            pl.BlockSpec((tq, 3 * H), lambda b, qi: (b * nqt + qi, 0)),
            # full-seq K/V rows for this batch; index constant across qi so the
            # DMA is not re-issued per q-tile.
            pl.BlockSpec((seq, 3 * H), lambda b, qi: (b, 0)),
            pl.BlockSpec((1, 1, seq), lambda b, qi: (b, 0, 0)),
        ],
        out_specs=pl.BlockSpec((tq, H), lambda b, qi: (b * nqt + qi, 0)),
        scratch_shapes=[pltpu.VMEM((tq, H), jnp.float32)],
        compiler_params=pltpu.CompilerParams(
            dimension_semantics=("parallel", "parallel"),
            vmem_limit_bytes=_VMEM_LIMIT),
        cost_estimate=pl.CostEstimate(
            flops=flops,
            transcendentals=batch * num_heads * seq * seq,
            bytes_accessed=bytes_accessed),
    )(qkv, qkv, add_mask)


# ----------------------------- model definition ----------------------------- #

CFG = dict(vocab=100, max_pos=64, type_vocab=2, hidden=32, heads=2,
           head_dim=16, inter=64, layers=2)


def _dense_init(key, fan_in, fan_out):
    w = 0.02 * jax.random.normal(key, (fan_in, fan_out), jnp.float32)
    b = jnp.zeros((fan_out,), jnp.float32)
    return w, b


def init_params(key, cfg):
    H, I = cfg["hidden"], cfg["inter"]
    keys = jax.random.split(key, 4 + cfg["layers"])
    p = {
        "word_emb": 0.02 * jax.random.normal(keys[0], (cfg["vocab"], H), jnp.float32),
        "pos_emb":  0.02 * jax.random.normal(keys[1], (cfg["max_pos"], H), jnp.float32),
        "type_emb": 0.02 * jax.random.normal(keys[2], (cfg["type_vocab"], H), jnp.float32),
        "emb_ln_g": jnp.ones((H,), jnp.float32),
        "emb_ln_b": jnp.zeros((H,), jnp.float32),
        "layers": [],
    }
    attn_scale = 1.0 / math.sqrt(cfg["head_dim"])
    for li in range(cfg["layers"]):
        lk = jax.random.split(keys[4 + li], 6)
        wq, bq = _dense_init(lk[0], H, H)
        wk, bk = _dense_init(lk[1], H, H)
        wv, bv = _dense_init(lk[2], H, H)
        wo, bo = _dense_init(lk[3], H, H)
        wi, bi = _dense_init(lk[4], H, I)
        wo2, bo2 = _dense_init(lk[5], I, H)
        p["layers"].append(dict(
            # fused QKV projection: (H, 3H) weight, (3H,) bias; the softmax
            # 1/sqrt(head_dim) scale is baked into the Q columns (Q' = Q/sqrt(d)).
            w_qkv=jnp.concatenate([wq * attn_scale, wk, wv], axis=1).astype(jnp.bfloat16),
            b_qkv=jnp.concatenate([bq * attn_scale, bk, bv], axis=0),
            wo=wo.astype(jnp.bfloat16), bo=bo,
            wi=wi.astype(jnp.bfloat16), bi=bi,
            wo2=wo2.astype(jnp.bfloat16), bo2=bo2,
            ln1_g=jnp.ones((H,), jnp.float32), ln1_b=jnp.zeros((H,), jnp.float32),
            ln2_g=jnp.ones((H,), jnp.float32), ln2_b=jnp.zeros((H,), jnp.float32)))
    wp, bp = _dense_init(keys[3], H, H)
    p["pooler_w"], p["pooler_b"] = wp, bp          # pooler stays f32 / plain XLA
    return p


def bert_forward(params, input_ids, mask, cfg):
    B, S = input_ids.shape
    H, nh, hd = cfg["hidden"], cfg["heads"], cfg["head_dim"]

    # ---- embeddings (gathers = plain-JAX glue, LayerNorm = kernel) ----
    # TODO(synk): token_type ids hardcoded to 0 (reference passes token_type_ids=None).
    we = jnp.take(params["word_emb"], input_ids, axis=0)            # (B,S,H) f32
    pe = params["pos_emb"][:S][None, :, :]                          # (1,S,H)
    te = jnp.take(params["type_emb"], jnp.zeros_like(input_ids), axis=0)
    emb = (we + pe + te).reshape(B * S, H)                          # f32
    x = layernorm(emb, params["emb_ln_g"], params["emb_ln_b"])      # (B*S,H) bf16
    # TODO(synk): dropout layers are identity in eval mode and are omitted.

    # additive attention mask per batch: (B, 1, S), f32
    add_mask = ((1.0 - mask.astype(jnp.float32)) * -1e9)[:, None, :]

    for lp in params["layers"]:
        # fused Q|K|V projection: one bf16 matmul, (B*S, 3H)
        qkv = matmul_fused(x, lp["w_qkv"], lp["b_qkv"])
        # attention in native (B*S, H) layout, q-row tiled
        ctx = attention(qkv, add_mask, batch=B, seq=S,
                        num_heads=nh, head_dim=hd)                  # (B*S,H) bf16
        # attention-output dense with fused residual-add + LayerNorm epilogue
        x = matmul_fused(ctx, lp["wo"], lp["bo"],
                         residual=x, ln_params=(lp["ln1_g"], lp["ln1_b"]))
        # FFN: intermediate dense + GELU, then output dense with fused +res+LN
        inter = matmul_fused(x, lp["wi"], lp["bi"], activation="gelu")
        x = matmul_fused(inter, lp["wo2"], lp["bo2"],
                         residual=x, ln_params=(lp["ln2_g"], lp["ln2_b"]))

    sequence_output = x.reshape(B, S, H).astype(jnp.float32)
    # pooler: tanh(cls @ Wp + bp) on B rows -> tiny GEMM, plain XLA (a
    # grid=(1,1,1) pallas_call is pure launch/DMA overhead here).
    cls = sequence_output[:, 0, :]                                  # (B,H) f32
    pooled_output = jnp.tanh(cls @ params["pooler_w"] + params["pooler_b"])
    # return_dict=False semantics: (last_hidden_state, pooler_output)
    return sequence_output, pooled_output


# --------------------------------- main ------------------------------------- #

if __name__ == "__main__":
    key = jax.random.PRNGKey(0)
    k_param, k_ids = jax.random.split(key)

    B, S = 2, 8
    params = init_params(k_param, CFG)
    input_id = jax.random.randint(k_ids, (B, S), 0, CFG["vocab"], dtype=jnp.int32)
    mask = jnp.ones((B, S), dtype=jnp.int32)
    mask = mask.at[1, 6:].set(0)   # exercise padding mask

    seq_out, pooled = bert_forward(params, input_id, mask, CFG)
    jax.block_until_ready((seq_out, pooled))
    assert seq_out.shape == (B, S, CFG["hidden"])
    assert pooled.shape == (B, CFG["hidden"])
    assert jnp.all(jnp.isfinite(seq_out)) and jnp.all(jnp.isfinite(pooled))
    print("KERNEL_OK")
</pallas_src>

<mosaic_0001>
module attributes {stable_mosaic.version = 11 : i64} {
  func.func @_layernorm_kernel(%arg0: i32, %arg1: memref<16x32xf32, #tpu.memory_space<vmem>>, %arg2: memref<1x32xf32, #tpu.memory_space<vmem>>, %arg3: memref<1x32xf32, #tpu.memory_space<vmem>>, %arg4: memref<16x32xbf16, #tpu.memory_space<vmem>>) attributes {dimension_semantics = [#tpu.dimension_semantics<parallel>], iteration_bounds = array<i64: 1>, scalar_prefetch = 0 : i64, scratch_operands = 0 : i64, tpu.core_type = #tpu.core_type<tc>, window_params = [{transform_indices = @transform_0, window_bounds = array<i64: 16, 32>}, {pipeline_mode = #tpu.pipeline_mode<synchronous>, transform_indices = @transform_1, window_bounds = array<i64: 1, 32>}, {pipeline_mode = #tpu.pipeline_mode<synchronous>, transform_indices = @transform_2, window_bounds = array<i64: 1, 32>}, {transform_indices = @transform_3, window_bounds = array<i64: 16, 32>}]} {
    %c0 = arith.constant 0 : index
    %c0_0 = arith.constant 0 : index
    %0 = vector.load %arg1[%c0, %c0_0] : memref<16x32xf32, #tpu.memory_space<vmem>>, vector<16x32xf32>
    %cst = arith.constant dense<0.000000e+00> : vector<16xf32>
    %1 = vector.multi_reduction <add>, %0, %cst [1] : vector<16x32xf32> to vector<16xf32>
    %2 = vector.shape_cast %1 : vector<16xf32> to vector<16x1xf32>
    %cst_1 = arith.constant 3.200000e+01 : f32
    %3 = vector.broadcast %cst_1 : f32 to vector<16x1xf32>
    %4 = arith.divf %2, %3 : vector<16x1xf32>
    %5 = vector.broadcast %4 : vector<16x1xf32> to vector<16x32xf32>
    %6 = arith.subf %0, %5 : vector<16x32xf32>
    %7 = arith.mulf %6, %6 : vector<16x32xf32>
    %cst_2 = arith.constant dense<0.000000e+00> : vector<16xf32>
    %8 = vector.multi_reduction <add>, %7, %cst_2 [1] : vector<16x32xf32> to vector<16xf32>
    %9 = vector.shape_cast %8 : vector<16xf32> to vector<16x1xf32>
    %cst_3 = arith.constant 3.200000e+01 : f32
    %10 = vector.broadcast %cst_3 : f32 to vector<16x1xf32>
    %11 = arith.divf %9, %10 : vector<16x1xf32>
    %12 = vector.broadcast %4 : vector<16x1xf32> to vector<16x32xf32>
    %13 = arith.subf %0, %12 : vector<16x32xf32>
    %cst_4 = arith.constant 9.99999996E-13 : f32
    %14 = vector.broadcast %cst_4 : f32 to vector<16x1xf32>
    %15 = arith.addf %11, %14 : vector<16x1xf32>
    %16 = math.rsqrt %15 : vector<16x1xf32>
    %17 = vector.broadcast %16 : vector<16x1xf32> to vector<16x32xf32>
    %18 = arith.mulf %13, %17 : vector<16x32xf32>
    %c0_5 = arith.constant 0 : index
    %c0_6 = arith.constant 0 : index
    %19 = vector.load %arg2[%c0_5, %c0_6] : memref<1x32xf32, #tpu.memory_space<vmem>>, vector<1x32xf32>
    %20 = vector.broadcast %19 : vector<1x32xf32> to vector<16x32xf32>
    %21 = arith.mulf %18, %20 : vector<16x32xf32>
    %c0_7 = arith.constant 0 : index
    %c0_8 = arith.constant 0 : index
    %22 = vector.load %arg3[%c0_7, %c0_8] : memref<1x32xf32, #tpu.memory_space<vmem>>, vector<1x32xf32>
    %23 = vector.broadcast %22 : vector<1x32xf32> to vector<16x32xf32>
    %24 = arith.addf %21, %23 : vector<16x32xf32>
    %25 = arith.truncf %24 : vector<16x32xf32> to vector<16x32xbf16>
    %c0_9 = arith.constant 0 : index
    %c0_10 = arith.constant 0 : index
    %26 = vector.load %arg4[%c0_9, %c0_10] : memref<16x32xbf16, #tpu.memory_space<vmem>>, vector<16x32xbf16>
    tpu.vector_store %arg4[%c0_9, %c0_10], %25 {strides = array<i32>} : memref<16x32xbf16, #tpu.memory_space<vmem>>, vector<16x32xbf16>,
    return
  }
  func.func @transform_0(%arg0: i32) -> (i32, i32) {
    %c0_i32 = arith.constant 0 : i32
    %c0_i32_0 = arith.constant 0 : i32
    return %arg0, %c0_i32 : i32, i32
  }
  func.func @transform_1(%arg0: i32) -> (i32, i32) {
    %c0_i32 = arith.constant 0 : i32
    %c0_i32_0 = arith.constant 0 : i32
    %c0_i32_1 = arith.constant 0 : i32
    return %c0_i32, %c0_i32_0 : i32, i32
  }
  func.func @transform_2(%arg0: i32) -> (i32, i32) {
    %c0_i32 = arith.constant 0 : i32
    %c0_i32_0 = arith.constant 0 : i32
    %c0_i32_1 = arith.constant 0 : i32
    return %c0_i32, %c0_i32_0 : i32, i32
  }
  func.func @transform_3(%arg0: i32) -> (i32, i32) {
    %c0_i32 = arith.constant 0 : i32
    %c0_i32_0 = arith.constant 0 : i32
    return %arg0, %c0_i32 : i32, i32
  }
}

</mosaic_0001>

<llo_original>
// kernel: tpu_custom_call.1
$region0: #{tpu_custom_call.1}
  #allocation0 [shape = 'u32[]', space=smem, size = 0x4, offset = 0x4, fixed_abs, tag = 'smem constant byte address 0x4 - core index']
  #allocation1 [shape = 'u32[72,128]{1,0:T(1,128)}', space=vmem, size = 0x9000, scoped, tag = 'internal scratch']
  %s0 = inlined_call_operand.hbm [shape: f32[16,32], index: 0, kind: input, shape index: {}]
  %s1 = inlined_call_operand.hbm [shape: f32[1,32], index: 1, kind: input, shape index: {}]
  %s2 = inlined_call_operand.vmem [shape: f32[1,32], index: 2, kind: input, shape index: {}]
  %s3 = inlined_call_operand.hbm [shape: bf16[16,32], index: 3, kind: output, shape index: {}]
  %s4 = sld [smem:[#allocation0]]
  $region30: #{tpu_custom_call.1} parent=0
    _
  %s6 = ssub.s32 1, %s4
  %s7 = scalar_select 0, %s6, %s4
  $region1: #{tpu_custom_call.1} parent=0
    #allocation2 [shape = 'u8[8192]{0}', space=vmem, size = 0x2000, scoped, tag = 'input window, operand 0, single buffered']
    #allocation3 [shape = 's32[1]{0}', space=sflag, size = 0x4, scoped, tag = 'scoped memory for tpu_custom_call.1']
    #allocation4 [shape = 's32[1]{0}', space=sflag, size = 0x4, scoped, tag = 'scoped memory for tpu_custom_call.1']
    #allocation5 [shape = 'u8[512]{0}', space=vmem, size = 0x400, scoped, tag = 'input window, operand 1, single buffered']
    #allocation6 [shape = 's32[1]{0}', space=sflag, size = 0x4, scoped, tag = 'scoped memory for tpu_custom_call.1']
    #allocation7 [shape = 'u8[4096]{0}', space=vmem, size = 0x1000, scoped, tag = 'output window, operand 0, single buffered']
    %8 = vsyncpa [#allocation3], 0
    %9 = vsyncpa [#allocation6], 0
    %10 = vsyncpa [#allocation4], 0
    // Predicated region
    $region2: #{tpu_custom_call.1} parent=1 // pred_check
      _
    $region3: #{tpu_custom_call.1} parent=1 // pred_check_branch
      %12 = sbr.rel (0) target = $region5
    $region4: #{tpu_custom_call.1} parent=1 // pred_region
      %14 = vsyncadd [#allocation3], 0
      %s15 = sshll.u32 %s0, 4
      %s16 = int_to_ptr.hbm [resolvable:$true] %s15
      %s17 = sshll.u32 [#allocation2], 4
      %s18 = int_to_ptr.vmem [resolvable:$true] %s17
      %23 = dma.hbm_to_vmem [thread:$0]  %s16, 256, %s18, [#allocation3], 128, 128, 8
    $region5: #{tpu_custom_call.1} parent=1 // pred_fallthru
      _
    // Predicated region
    $region6: #{tpu_custom_call.1} parent=1 // pred_check
      _
    $region7: #{tpu_custom_call.1} parent=1 // pred_check_branch
      %25 = sbr.rel (0) target = $region9
    $region8: #{tpu_custom_call.1} parent=1 // pred_region
      %27 = vsyncadd [#allocation6], 0
      %s29 = sshll.u32 %s1, 4
      %s30 = int_to_ptr.hbm [resolvable:$true] %s29
      %s31 = sshll.u32 [#allocation5], 4
      %s32 = int_to_ptr.vmem [resolvable:$true] %s31
      %34 = dma.hbm_to_vmem [thread:$0]  %s30, 16, %s32, [#allocation6]
    $region9: #{tpu_custom_call.1} parent=1 // pred_fallthru
      _
    // Predicated region
    $region10: #{tpu_custom_call.1} parent=1 // pred_check
      _
    $region11: #{tpu_custom_call.1} parent=1 // pred_check_branch
      %36 = sbr.rel (0) target = $region13
    $region12: #{tpu_custom_call.1} parent=1 // pred_region
      _
    $region13: #{tpu_custom_call.1} parent=1 // pred_fallthru
      _
    // Predicated region
    $region14: #{tpu_custom_call.1} parent=1 // pred_check
      _
    $region15: #{tpu_custom_call.1} parent=1 // pred_check_branch
      %38 = sbr.rel (0) target = $region17
    $region16: #{tpu_custom_call.1} parent=1 // pred_region
      %40 = dma.done [#allocation3], 256
    $region17: #{tpu_custom_call.1} parent=1 // pred_fallthru
      _
    // Predicated region
    $region18: #{tpu_custom_call.1} parent=1 // pred_check
      _
    $region19: #{tpu_custom_call.1} parent=1 // pred_check_branch
      %42 = sbr.rel (0) target = $region21
    $region20: #{tpu_custom_call.1} parent=1 // pred_region
      %44 = dma.done [#allocation6], 16
    $region21: #{tpu_custom_call.1} parent=1 // pred_fallthru
      _
    %v45 = vld [vmem:[#allocation2] sm:$0xff]
    %v46 = vld [vmem:[#allocation2 + $0x8] sm:$0xff]
    %vm47 = vcmask 261120
    %v48 = vsel %vm47, %v45, 0.0
    %49 = vadd.xlane.f32.xlu0 %v48
    %v50 = vpop.xlane.xlu0 %49
    %v51 = vsel %vm47, %v46, 0.0
    %52 = vadd.xlane.f32.xlu0 %v51
    %v53 = vpop.xlane.xlu0 %52
    %v54 = vrcp.pop 32.0
    %v55 = vmul.f32 32.0, %v54
    %v56 = vsub.f32 1.0, %v55
    %v57 = vmul.f32 %v54, %v56
    %v58 = vadd.f32 %v54, %v57
    %vm59 = vweird.f32 %v54
    %v60 = vsel %vm59, %v54, %v58
    %v61 = vmul.f32 %v50, %v60
    %v62 = vmul.f32 %v53, %v60
    %v63 = vsub.f32 %v45, %v61
    %v64 = vsub.f32 %v46, %v62
    %v65 = vmul.f32 %v63, %v63
    %v66 = vmul.f32 %v64, %v64
    %v67 = vsel %vm47, %v65, 0.0
    %68 = vadd.xlane.f32.xlu0 %v67
    %v69 = vpop.xlane.xlu0 %68
    %v70 = vsel %vm47, %v66, 0.0
    %71 = vadd.xlane.f32.xlu0 %v70
    %v72 = vpop.xlane.xlu0 %71
    %v73 = vmul.f32 %v69, %v60
    %v74 = vmul.f32 %v72, %v60
    %v75 = vadd.f32 %v73, 1e-12
    %v76 = vadd.f32 %v74, 1e-12
    %v77 = vrsqrt.pop %v75
    %v78 = vmul.f32 %v77, %v75
    %v79 = vmul.f32 %v78, %v77
    %v80 = vmul.f32 0.5, %v79
    %v81 = vsub.f32 1.5, %v80
    %v82 = vmul.f32 %v77, %v81
    %vm83 = vweird.f32 %v75
    %vm84 = vweird.f32 %v77
    %vm85 = vmor %vm83, %vm84
    %v86 = vsel %vm85, %v77, %v82
    %v87 = vrsqrt.pop %v76
    %v88 = vmul.f32 %v87, %v76
    %v89 = vmul.f32 %v88, %v87
    %v90 = vmul.f32 0.5, %v89
    %v91 = vsub.f32 1.5, %v90
    %v92 = vmul.f32 %v87, %v91
    %vm93 = vweird.f32 %v76
    %vm94 = vweird.f32 %v87
    %vm95 = vmor %vm93, %vm94
    %v96 = vsel %vm95, %v87, %v92
    %v97 = vmul.f32 %v63, %v86
    %v98 = vmul.f32 %v64, %v96
    %v99 = vld [vmem:[#allocation5] sm:$0x1]
    %v101 = vperm.slane %v99, 0
    %v103 = vmul.f32 %v97, %v101
    %v104 = vmul.f32 %v98, %v101
    %v105 = vld [vmem:[%s2] sm:$0x1]
    %v107 = vperm.slane %v105, 0
    %v109 = vadd.f32 %v103, %v107
    %v110 = vadd.f32 %v104, %v107
    %v111 = vpack.c.bf16 %v109, %v109
    %v112 = vpack.c.bf16 %v110, %v110
    %vm113 = vcmask 257024
    %114 = vst.msk [vmem:[#allocation7] sm:$0xf] %vm113, %v111
    %115 = vst.msk [vmem:[#allocation7 + $0x4] sm:$0xf] %vm113, %v112
    // Predicated region
    $region22: #{tpu_custom_call.1} parent=1 // pred_check
      _
    $region23: #{tpu_custom_call.1} parent=1 // pred_check_branch
      %117 = sbr.rel (0) target = $region25
    $region24: #{tpu_custom_call.1} parent=1 // pred_region
      %119 = vsyncadd [#allocation4], 0
      %s120 = sshll.u32 [#allocation7], 4
      %s121 = int_to_ptr.vmem [resolvable:$true] %s120
      %s122 = sshll.u32 %s3, 4
      %s123 = int_to_ptr.hbm [resolvable:$true] %s122
      %128 = dma.vmem_to_hbm [thread:$0]  %s121, 128, %s123, [#allocation4], 64, 64, 4
    $region25: #{tpu_custom_call.1} parent=1 // pred_fallthru
      _
    // Predicated region
    $region26: #{tpu_custom_call.1} parent=1 // pred_check
      _
    $region27: #{tpu_custom_call.1} parent=1 // pred_check_branch
      %130 = sbr.rel (0) target = $region29
    $region28: #{tpu_custom_call.1} parent=1 // pred_region
      %132 = dma.done [#allocation4], 128
    $region29: #{tpu_custom_call.1} parent=1 // pred_fallthru
      _
    %133 = vsyncpa [#allocation3], 1
    %134 = vsyncpa [#allocation6], 1
    %135 = vsyncpa [#allocation4], 1

</llo_original>
